<compile_context>
chip_gen: v7x
topology: tpu7x:2x2x1
jax: 0.10.0
libtpu: 0.0.40
codegen_flags: <defaults>
</compile_context>

<pallas_src>
import functools

import jax
import jax.numpy as jnp
from jax.experimental import pallas as pl
from jax.experimental.pallas import tpu as pltpu


def _round_up(x, m):
    return ((x + m - 1) // m) * m


def _lstm_bot_kernel(
    feat_ref, env_ref, state_ref, w_ref, b_ref,      # inputs
    head_ref, state_out_ref,                         # outputs
    *, vec_size, hidden_size, num_layers,
):
    f32 = jnp.float32
    bf16 = jnp.bfloat16
    V, H, L = vec_size, hidden_size, num_layers

    # Row offsets inside the packed weight blob [V + L*2H + 3H, NC] (bf16).
    lstm_r0 = V
    head_r0 = V + L * 2 * H

    # 1) inp_enc: Linear(V -> H).  Features arrive f32; cast to bf16 right
    #    before the MXU push.  Weight cols >= H are zero-padded, so one
    #    full-width push and keep the first H result lanes.
    feat_bf = feat_ref[...].astype(bf16)
    x_full = jnp.dot(feat_bf, w_ref[0:V, :], preferred_element_type=f32)
    x = x_full[:, :H] + b_ref[0:1, :H]                         # [TB, H] f32

    # 2) LayerNorm (elementwise_affine=False, eps=1e-5, biased variance), f32.
    mu = jnp.mean(x, axis=-1, keepdims=True)
    var = jnp.mean((x - mu) ** 2, axis=-1, keepdims=True)
    ln = (x - mu) * jax.lax.rsqrt(var + 1e-5)                  # [TB, H] f32

    # 3) Single-step multi-layer LSTM (PyTorch gate order i, f, g, o).
    #    Two small MXU pushes per layer; no VMEM store->load on the serial
    #    recurrent chain.  The g-gate columns of the packed weights/bias were
    #    pre-scaled by 2 so tanh(z) = 2*sigmoid(2z) - 1 needs only one
    #    full-width sigmoid (EUP) pass per layer.
    layer_in = ln
    h_new_list = []
    c_new_list = []
    for l in range(L):                                         # static unroll
        h = state_ref[:, l * H:(l + 1) * H]                    # [TB, H] f32
        c = state_ref[:, (L + l) * H:(L + l + 1) * H]          # [TB, H] f32

        w_ih = w_ref[lstm_r0 + l * 2 * H: lstm_r0 + l * 2 * H + H, :]
        w_hh = w_ref[lstm_r0 + l * 2 * H + H: lstm_r0 + (l + 1) * 2 * H, :]

        # Padded columns [4H:NC] of w_ih/w_hh are zero, so the [:, :4H] slice
        # only drops zeros.
        gates = (jnp.dot(layer_in.astype(bf16), w_ih,
                         preferred_element_type=f32)
                 + jnp.dot(h.astype(bf16), w_hh,
                           preferred_element_type=f32)
                 )[:, :4 * H] + b_ref[1 + l:2 + l, :4 * H]     # [TB, 4H] f32

        sig = jax.nn.sigmoid(gates)                            # single EUP pass
        i_g = sig[:, 0 * H:1 * H]
        f_g = sig[:, 1 * H:2 * H]
        g_g = 2.0 * sig[:, 2 * H:3 * H] - 1.0                  # tanh via sigmoid
        o_g = sig[:, 3 * H:4 * H]

        c_new = f_g * c + i_g * g_g
        h_new = o_g * jnp.tanh(c_new)

        h_new_list.append(h_new)
        c_new_list.append(c_new)
        layer_in = h_new

    # One lane-dense, unmasked store of the whole [TB, 2LH] state row
    # ([h_0..h_{L-1} | c_0..c_{L-1}]) instead of 2L masked partial stores.
    state_out_ref[...] = jnp.concatenate(h_new_list + c_new_list, axis=-1)

    # 4) Actor + critic head over cat([lstm_out, env_emb, ln], -1) as three
    #    K=H MXU pushes into one lane-dense padded [TB, NC] output
    #    (cols [0:A) = logits, col A = value, rest zero).
    head = (jnp.dot(layer_in.astype(bf16),
                    w_ref[head_r0:head_r0 + H, :],
                    preferred_element_type=f32)
            + jnp.dot(env_ref[...].astype(bf16),
                      w_ref[head_r0 + H:head_r0 + 2 * H, :],
                      preferred_element_type=f32)
            + jnp.dot(ln.astype(bf16),
                      w_ref[head_r0 + 2 * H:head_r0 + 3 * H, :],
                      preferred_element_type=f32)
            + b_ref[1 + L:2 + L, :])
    head_ref[...] = head


def pack_params(raw, *, vec_size, action_size, hidden_size, num_layers):
    """Pre-pack raw (PyTorch-layout) params into two kernel blobs.

    NOTE: the g-gate (columns [2H:3H]) of the LSTM weights and fused bias is
    pre-scaled by 2 — the kernel relies on tanh(z) = 2*sigmoid(2z) - 1.
    """
    V, A, H, L = vec_size, action_size, hidden_size, num_layers
    f32 = jnp.float32
    NC = _round_up(max(4 * H, A + 1, H), 128)

    g_scale = jnp.ones((4 * H,), f32).at[2 * H:3 * H].set(2.0)

    # Weight blob rows: [enc (V) | lstm layer0 (2H) ... layerL-1 (2H) | head (3H)]
    w_enc = jnp.zeros((V, NC), f32).at[:, :H].set(raw["w_enc_t"])
    w_lstm = jnp.zeros((L * 2 * H, NC), f32)
    for l in range(L):
        w_lstm = w_lstm.at[l * 2 * H: l * 2 * H + H, :4 * H].set(
            raw["w_ih_t"][l] * g_scale)
        w_lstm = w_lstm.at[l * 2 * H + H: (l + 1) * 2 * H, :4 * H].set(
            raw["w_hh_t"][l] * g_scale)
    w_head = jnp.zeros((3 * H, NC), f32)
    w_head = w_head.at[:, :A].set(raw["w_act_t"])
    w_head = w_head.at[:, A:A + 1].set(raw["w_crit_t"])
    w_blob = jnp.concatenate([w_enc, w_lstm, w_head], axis=0).astype(jnp.bfloat16)

    # Bias blob rows: [enc | lstm (b_ih + b_hh, g-gate x2) per layer | head]
    b_blob = jnp.zeros((L + 2, NC), f32)
    b_blob = b_blob.at[0, :H].set(raw["b_enc"][0])
    b_blob = b_blob.at[1:1 + L, :4 * H].set((raw["b_ih"] + raw["b_hh"]) * g_scale)
    b_blob = b_blob.at[1 + L, :A].set(raw["b_act"][0])
    b_blob = b_blob.at[1 + L, A].set(raw["b_crit"][0, 0])

    return {"w_blob": w_blob, "b_blob": b_blob,
            "env_emb": raw["env_emb"], "mem_emb": raw["mem_emb"]}


def mems_to_slab(mems, *, num_layers, hidden_size):
    """PyTorch interleaved _flat_mem layout -> lane-dense [B, h_0..h_L|c_0..c_L].

    Use only at init / episode boundaries (layout-hostile transpose)."""
    B = mems.shape[0]
    m = mems.reshape(B, num_layers, hidden_size, 2)
    return jnp.transpose(m, (0, 3, 1, 2)).reshape(B, 2 * num_layers * hidden_size)


def slab_to_mems(slab, *, num_layers, hidden_size):
    """Lane-dense h|c slab -> exact PyTorch interleaved _flat_mem layout."""
    B = slab.shape[0]
    s = slab.reshape(B, 2, num_layers, hidden_size)
    return jnp.transpose(s, (0, 2, 3, 1)).reshape(B, 2 * num_layers * hidden_size)


@functools.partial(jax.jit, static_argnames=("vec_size", "num_layers",
                                             "hidden_size", "action_size",
                                             "batch_tile"))
def lstm_bot_forward(packed, features, env_ids, state_slab, *,
                     vec_size, num_layers, hidden_size, action_size,
                     batch_tile=256):
    """Single-step LSTMBot forward.

    `state_slab` is the lane-dense [B, 2*L*H] h|c slab; convert to/from the
    PyTorch interleaved mems layout with mems_to_slab / slab_to_mems only at
    init / episode boundaries.
    """
    B = features.shape[0]
    V, H, L, A = vec_size, hidden_size, num_layers, action_size
    NC = _round_up(max(4 * H, A + 1, H), 128)
    rows = V + L * 2 * H + 3 * H

    # Batch tile: >=256 rows fills the MXU M dim on v6e/v7x; small batches pad
    # to a multiple of 16 only.  Per-step VMEM at TB=256 is ~1 MiB (double
    # buffered), far under v7x's 64 MiB.
    TB = min(batch_tile, _round_up(B, 16))
    Bp = _round_up(B, TB)

    # glue: env encoder modeled as an embedding lookup (get_env_encoder)
    env_vec = packed["env_emb"][env_ids].astype(jnp.float32)        # [B, H]

    feats = features.astype(jnp.float32)        # bf16 cast happens in-kernel
    state_in = state_slab.astype(jnp.float32)
    if Bp != B:
        pad = ((0, Bp - B), (0, 0))
        feats = jnp.pad(feats, pad)
        env_vec = jnp.pad(env_vec, pad)
        state_in = jnp.pad(state_in, pad)

    kernel = functools.partial(_lstm_bot_kernel, vec_size=V,
                               hidden_size=H, num_layers=L)

    def row_spec(cols):
        return pl.BlockSpec((TB, cols), lambda i: (i, 0))

    def pinned(shape):                       # resident across all grid steps
        return pl.BlockSpec(shape, lambda i: (0, 0))

    cost = pl.CostEstimate(
        flops=2 * Bp * NC * rows,
        transcendentals=Bp * L * 5 * H,
        bytes_accessed=(4 * Bp * (V + H + 4 * L * H + NC)
                        + 2 * rows * NC + 4 * (L + 2) * NC))

    head_out, state_out = pl.pallas_call(
        kernel,
        grid=(Bp // TB,),
        out_shape=(jax.ShapeDtypeStruct((Bp, NC), jnp.float32),
                   jax.ShapeDtypeStruct((Bp, 2 * L * H), jnp.float32)),
        in_specs=[row_spec(V), row_spec(H), row_spec(2 * L * H),
                  pinned((rows, NC)), pinned((L + 2, NC))],
        out_specs=(row_spec(NC), row_spec(2 * L * H)),
        compiler_params=pltpu.CompilerParams(
            dimension_semantics=("parallel",)),
        cost_estimate=cost,
    )(feats, env_vec, state_in, packed["w_blob"], packed["b_blob"])

    logits = head_out[:B, :A]
    values = head_out[:B, A:A + 1]
    next_state = state_out[:B]

    # TODO(synk): torch.distributions.Categorical has no Pallas equivalent;
    #             raw logits are returned instead (dist = Categorical(logits)).
    # TODO(synk): for multi-step rollouts, add a time grid axis ("arbitrary")
    #             with h/c carried in VMEM scratch so launch overhead and the
    #             weight-blob DMA amortize over T steps.
    return {"logits": logits, "v": values, "mems": next_state}


def init_params(key, vec_size, action_size, hidden_size, num_layers, num_envs):
    H, V, A, L = hidden_size, vec_size, action_size, num_layers
    ks = jax.random.split(key, 12)
    s = 0.1
    return {
        "w_enc_t": s * jax.random.normal(ks[0], (V, H), jnp.float32),
        "b_enc":   s * jax.random.normal(ks[1], (1, H), jnp.float32),
        "env_emb": s * jax.random.normal(ks[2], (num_envs, H), jnp.float32),
        "w_ih_t":  s * jax.random.normal(ks[3], (L, H, 4 * H), jnp.float32),
        "w_hh_t":  s * jax.random.normal(ks[4], (L, H, 4 * H), jnp.float32),
        "b_ih":    s * jax.random.normal(ks[5], (L, 4 * H), jnp.float32),
        "b_hh":    s * jax.random.normal(ks[6], (L, 4 * H), jnp.float32),
        "w_act_t": s * jax.random.normal(ks[7], (3 * H, A), jnp.float32),
        "b_act":   s * jax.random.normal(ks[8], (1, A), jnp.float32),
        "w_crit_t": s * jax.random.normal(ks[9], (3 * H, 1), jnp.float32),
        "b_crit":  s * jax.random.normal(ks[10], (1, 1), jnp.float32),
        # memory_encoder (init_memory) also modeled as an embedding table
        "mem_emb": s * jax.random.normal(ks[11], (num_envs, 2 * L * H), jnp.float32),
    }


def lstm_bot_reference(raw, features, env_ids, mems, *,
                       num_layers, hidden_size):
    """Pure-JAX f32 reference matching the PyTorch forward (unscaled weights)."""
    H, L = hidden_size, num_layers
    B = features.shape[0]
    x = features.astype(jnp.float32) @ raw["w_enc_t"] + raw["b_enc"]
    mu = x.mean(-1, keepdims=True)
    var = ((x - mu) ** 2).mean(-1, keepdims=True)
    ln = (x - mu) / jnp.sqrt(var + 1e-5)
    m = mems.reshape(B, L, H, 2).transpose(1, 0, 2, 3)
    h0, c0 = m[..., 0], m[..., 1]
    layer_in, h1, c1 = ln, [], []
    for l in range(L):
        gates = (layer_in @ raw["w_ih_t"][l] + raw["b_ih"][l]
                 + h0[l] @ raw["w_hh_t"][l] + raw["b_hh"][l])
        i = jax.nn.sigmoid(gates[:, :H]); f = jax.nn.sigmoid(gates[:, H:2 * H])
        g = jnp.tanh(gates[:, 2 * H:3 * H]); o = jax.nn.sigmoid(gates[:, 3 * H:])
        c_n = f * c0[l] + i * g
        h_n = o * jnp.tanh(c_n)
        h1.append(h_n); c1.append(c_n)
        layer_in = h_n
    env_vec = raw["env_emb"][env_ids]
    cat = jnp.concatenate([layer_in, env_vec, ln], -1)
    logits = cat @ raw["w_act_t"] + raw["b_act"]
    values = cat @ raw["w_crit_t"] + raw["b_crit"]
    nm = jnp.stack([jnp.stack(h1), jnp.stack(c1)], -1)          # [L, B, H, 2]
    next_mems = jnp.transpose(nm, (1, 0, 2, 3)).reshape(B, -1)
    return logits, values, next_mems


if __name__ == "__main__":
    V, A, H, L = 64, 8, 32, 2      # vec_size, action_size, hidden_size, num_layers
    B, NUM_ENVS = 4, 10

    key = jax.random.PRNGKey(0)
    pk, fk, ek = jax.random.split(key, 3)
    raw = init_params(pk, V, A, H, L, NUM_ENVS)
    packed = pack_params(raw, vec_size=V, action_size=A,
                         hidden_size=H, num_layers=L)

    features = jax.random.normal(fk, (B, V), jnp.float32)        # obs.features
    env_ids = jax.random.randint(ek, (B,), 0, NUM_ENVS)

    # init_memory(env_ids) in the PyTorch interleaved layout; convert to the
    # lane-dense h|c slab ONCE at the episode boundary.
    mems = raw["mem_emb"][env_ids]
    state_slab = mems_to_slab(mems, num_layers=L, hidden_size=H)

    out = lstm_bot_forward(packed, features, env_ids, state_slab,
                           vec_size=V, num_layers=L,
                           hidden_size=H, action_size=A)
    out = jax.tree_util.tree_map(jax.block_until_ready, out)

    assert out["logits"].shape == (B, A)
    assert out["v"].shape == (B, 1)
    assert out["mems"].shape == (B, 2 * L * H)

    # Numerical check vs pure-f32 reference (kernel uses bf16 MXU operands):
    # relative + absolute tolerance instead of a loose absolute-only check.
    ref_logits, ref_v, ref_mems = lstm_bot_reference(
        raw, features, env_ids, mems, num_layers=L, hidden_size=H)
    next_mems_torch = slab_to_mems(out["mems"], num_layers=L, hidden_size=H)

    def _close(name, got, ref, rtol=3e-2, atol=3e-2):
        err = float(jnp.max(jnp.abs(got - ref)))
        tol = float(atol + rtol * jnp.max(jnp.abs(ref)))
        assert err < tol, f"{name}: max abs err {err} > tol {tol}"

    _close("logits", out["logits"], ref_logits)
    _close("v", out["v"], ref_v)
    _close("mems", next_mems_torch, ref_mems)

    print("KERNEL_OK")
</pallas_src>

<mosaic_0001>
module attributes {stable_mosaic.version = 11 : i64} {
  func.func @_lstm_bot_kernel(%arg0: i32, %arg1: memref<16x64xf32, #tpu.memory_space<vmem>>, %arg2: memref<16x32xf32, #tpu.memory_space<vmem>>, %arg3: memref<16x128xf32, #tpu.memory_space<vmem>>, %arg4: memref<288x128xbf16, #tpu.memory_space<vmem>>, %arg5: memref<4x128xf32, #tpu.memory_space<vmem>>, %arg6: memref<16x128xf32, #tpu.memory_space<vmem>>, %arg7: memref<16x128xf32, #tpu.memory_space<vmem>>) attributes {dimension_semantics = [#tpu.dimension_semantics<parallel>], iteration_bounds = array<i64: 1>, scalar_prefetch = 0 : i64, scratch_operands = 0 : i64, tpu.core_type = #tpu.core_type<tc>, window_params = [{transform_indices = @transform_0, window_bounds = array<i64: 16, 64>}, {transform_indices = @transform_1, window_bounds = array<i64: 16, 32>}, {transform_indices = @transform_2, window_bounds = array<i64: 16, 128>}, {pipeline_mode = #tpu.pipeline_mode<synchronous>, transform_indices = @transform_3, window_bounds = array<i64: 288, 128>}, {pipeline_mode = #tpu.pipeline_mode<synchronous>, transform_indices = @transform_4, window_bounds = array<i64: 4, 128>}, {transform_indices = @transform_5, window_bounds = array<i64: 16, 128>}, {transform_indices = @transform_6, window_bounds = array<i64: 16, 128>}]} {
    %c0 = arith.constant 0 : index
    %c0_0 = arith.constant 0 : index
    %0 = vector.load %arg1[%c0, %c0_0] : memref<16x64xf32, #tpu.memory_space<vmem>>, vector<16x64xf32>
    %1 = arith.truncf %0 : vector<16x64xf32> to vector<16x64xbf16>
    %c0_1 = arith.constant 0 : index
    %c0_2 = arith.constant 0 : index
    %2 = vector.load %arg4[%c0_1, %c0_2] : memref<288x128xbf16, #tpu.memory_space<vmem>>, vector<64x128xbf16>
    %cst = arith.constant dense<0.000000e+00> : vector<16x128xf32>
    %3 = tpu.matmul %1, %2, %cst {dimension_numbers = #tpu.dot_dimension_numbers<[1], [0], [0], [1], [0, 0, 1, 1], [], []>} : vector<16x64xbf16>, vector<64x128xbf16>, vector<16x128xf32> -> vector<16x128xf32>
    %4 = vector.extract_strided_slice %3 {offsets = [0, 0], sizes = [16, 32], strides = [1, 1]} : vector<16x128xf32> to vector<16x32xf32>
    %c0_3 = arith.constant 0 : index
    %c0_4 = arith.constant 0 : index
    %5 = vector.load %arg5[%c0_3, %c0_4] : memref<4x128xf32, #tpu.memory_space<vmem>>, vector<1x32xf32>
    %6 = vector.broadcast %5 : vector<1x32xf32> to vector<16x32xf32>
    %7 = arith.addf %4, %6 : vector<16x32xf32>
    %cst_5 = arith.constant dense<0.000000e+00> : vector<16xf32>
    %8 = vector.multi_reduction <add>, %7, %cst_5 [1] : vector<16x32xf32> to vector<16xf32>
    %9 = vector.shape_cast %8 : vector<16xf32> to vector<16x1xf32>
    %cst_6 = arith.constant 3.200000e+01 : f32
    %10 = vector.broadcast %cst_6 : f32 to vector<16x1xf32>
    %11 = arith.divf %9, %10 : vector<16x1xf32>
    %12 = vector.broadcast %11 : vector<16x1xf32> to vector<16x32xf32>
    %13 = arith.subf %7, %12 : vector<16x32xf32>
    %14 = arith.mulf %13, %13 : vector<16x32xf32>
    %cst_7 = arith.constant dense<0.000000e+00> : vector<16xf32>
    %15 = vector.multi_reduction <add>, %14, %cst_7 [1] : vector<16x32xf32> to vector<16xf32>
    %16 = vector.shape_cast %15 : vector<16xf32> to vector<16x1xf32>
    %cst_8 = arith.constant 3.200000e+01 : f32
    %17 = vector.broadcast %cst_8 : f32 to vector<16x1xf32>
    %18 = arith.divf %16, %17 : vector<16x1xf32>
    %19 = vector.broadcast %11 : vector<16x1xf32> to vector<16x32xf32>
    %20 = arith.subf %7, %19 : vector<16x32xf32>
    %cst_9 = arith.constant 9.99999974E-6 : f32
    %21 = vector.broadcast %cst_9 : f32 to vector<16x1xf32>
    %22 = arith.addf %18, %21 : vector<16x1xf32>
    %23 = math.rsqrt %22 : vector<16x1xf32>
    %24 = vector.broadcast %23 : vector<16x1xf32> to vector<16x32xf32>
    %25 = arith.mulf %20, %24 : vector<16x32xf32>
    %c0_10 = arith.constant 0 : index
    %c0_11 = arith.constant 0 : index
    %26 = vector.load %arg3[%c0_10, %c0_11] : memref<16x128xf32, #tpu.memory_space<vmem>>, vector<16x32xf32>
    %c0_12 = arith.constant 0 : index
    %c64 = arith.constant 64 : index
    %27 = vector.load %arg3[%c0_12, %c64] : memref<16x128xf32, #tpu.memory_space<vmem>>, vector<16x32xf32>
    %c64_13 = arith.constant 64 : index
    %c0_14 = arith.constant 0 : index
    %28 = vector.load %arg4[%c64_13, %c0_14] : memref<288x128xbf16, #tpu.memory_space<vmem>>, vector<32x128xbf16>
    %c96 = arith.constant 96 : index
    %c0_15 = arith.constant 0 : index
    %29 = vector.load %arg4[%c96, %c0_15] : memref<288x128xbf16, #tpu.memory_space<vmem>>, vector<32x128xbf16>
    %30 = arith.truncf %25 : vector<16x32xf32> to vector<16x32xbf16>
    %cst_16 = arith.constant dense<0.000000e+00> : vector<16x128xf32>
    %31 = tpu.matmul %30, %28, %cst_16 {dimension_numbers = #tpu.dot_dimension_numbers<[1], [0], [0], [1], [0, 0, 1, 1], [], []>} : vector<16x32xbf16>, vector<32x128xbf16>, vector<16x128xf32> -> vector<16x128xf32>
    %32 = arith.truncf %26 : vector<16x32xf32> to vector<16x32xbf16>
    %cst_17 = arith.constant dense<0.000000e+00> : vector<16x128xf32>
    %33 = tpu.matmul %32, %29, %cst_17 {dimension_numbers = #tpu.dot_dimension_numbers<[1], [0], [0], [1], [0, 0, 1, 1], [], []>} : vector<16x32xbf16>, vector<32x128xbf16>, vector<16x128xf32> -> vector<16x128xf32>
    %34 = arith.addf %31, %33 : vector<16x128xf32>
    %c1 = arith.constant 1 : index
    %c0_18 = arith.constant 0 : index
    %35 = vector.load %arg5[%c1, %c0_18] : memref<4x128xf32, #tpu.memory_space<vmem>>, vector<1x128xf32>
    %36 = vector.broadcast %35 : vector<1x128xf32> to vector<16x128xf32>
    %37 = arith.addf %34, %36 : vector<16x128xf32>
    %38 = arith.negf %37 : vector<16x128xf32>
    %39 = math.exp %38 : vector<16x128xf32>
    %cst_19 = arith.constant 1.000000e+00 : f32
    %40 = vector.broadcast %cst_19 : f32 to vector<16x128xf32>
    %41 = arith.addf %40, %39 : vector<16x128xf32>
    %42 = arith.divf %40, %41 : vector<16x128xf32>
    %43 = vector.extract_strided_slice %42 {offsets = [0, 0], sizes = [16, 32], strides = [1, 1]} : vector<16x128xf32> to vector<16x32xf32>
    %44 = vector.extract_strided_slice %42 {offsets = [0, 32], sizes = [16, 32], strides = [1, 1]} : vector<16x128xf32> to vector<16x32xf32>
    %45 = vector.extract_strided_slice %42 {offsets = [0, 64], sizes = [16, 32], strides = [1, 1]} : vector<16x128xf32> to vector<16x32xf32>
    %cst_20 = arith.constant 2.000000e+00 : f32
    %46 = vector.broadcast %cst_20 : f32 to vector<16x32xf32>
    %47 = arith.mulf %46, %45 : vector<16x32xf32>
    %cst_21 = arith.constant 1.000000e+00 : f32
    %48 = vector.broadcast %cst_21 : f32 to vector<16x32xf32>
    %49 = arith.subf %47, %48 : vector<16x32xf32>
    %50 = vector.extract_strided_slice %42 {offsets = [0, 96], sizes = [16, 32], strides = [1, 1]} : vector<16x128xf32> to vector<16x32xf32>
    %51 = arith.mulf %44, %27 : vector<16x32xf32>
    %52 = arith.mulf %43, %49 : vector<16x32xf32>
    %53 = arith.addf %51, %52 : vector<16x32xf32>
    %54 = math.tanh %53 : vector<16x32xf32>
    %55 = arith.mulf %50, %54 : vector<16x32xf32>
    %c0_22 = arith.constant 0 : index
    %c32 = arith.constant 32 : index
    %56 = vector.load %arg3[%c0_22, %c32] : memref<16x128xf32, #tpu.memory_space<vmem>>, vector<16x32xf32>
    %c0_23 = arith.constant 0 : index
    %c96_24 = arith.constant 96 : index
    %57 = vector.load %arg3[%c0_23, %c96_24] : memref<16x128xf32, #tpu.memory_space<vmem>>, vector<16x32xf32>
    %c128 = arith.constant 128 : index
    %c0_25 = arith.constant 0 : index
    %58 = vector.load %arg4[%c128, %c0_25] : memref<288x128xbf16, #tpu.memory_space<vmem>>, vector<32x128xbf16>
    %c160 = arith.constant 160 : index
    %c0_26 = arith.constant 0 : index
    %59 = vector.load %arg4[%c160, %c0_26] : memref<288x128xbf16, #tpu.memory_space<vmem>>, vector<32x128xbf16>
    %60 = arith.truncf %55 : vector<16x32xf32> to vector<16x32xbf16>
    %cst_27 = arith.constant dense<0.000000e+00> : vector<16x128xf32>
    %61 = tpu.matmul %60, %58, %cst_27 {dimension_numbers = #tpu.dot_dimension_numbers<[1], [0], [0], [1], [0, 0, 1, 1], [], []>} : vector<16x32xbf16>, vector<32x128xbf16>, vector<16x128xf32> -> vector<16x128xf32>
    %62 = arith.truncf %56 : vector<16x32xf32> to vector<16x32xbf16>
    %cst_28 = arith.constant dense<0.000000e+00> : vector<16x128xf32>
    %63 = tpu.matmul %62, %59, %cst_28 {dimension_numbers = #tpu.dot_dimension_numbers<[1], [0], [0], [1], [0, 0, 1, 1], [], []>} : vector<16x32xbf16>, vector<32x128xbf16>, vector<16x128xf32> -> vector<16x128xf32>
    %64 = arith.addf %61, %63 : vector<16x128xf32>
    %c2 = arith.constant 2 : index
    %c0_29 = arith.constant 0 : index
    %65 = vector.load %arg5[%c2, %c0_29] : memref<4x128xf32, #tpu.memory_space<vmem>>, vector<1x128xf32>
    %66 = vector.broadcast %65 : vector<1x128xf32> to vector<16x128xf32>
    %67 = arith.addf %64, %66 : vector<16x128xf32>
    %68 = arith.negf %67 : vector<16x128xf32>
    %69 = math.exp %68 : vector<16x128xf32>
    %cst_30 = arith.constant 1.000000e+00 : f32
    %70 = vector.broadcast %cst_30 : f32 to vector<16x128xf32>
    %71 = arith.addf %70, %69 : vector<16x128xf32>
    %72 = arith.divf %70, %71 : vector<16x128xf32>
    %73 = vector.extract_strided_slice %72 {offsets = [0, 0], sizes = [16, 32], strides = [1, 1]} : vector<16x128xf32> to vector<16x32xf32>
    %74 = vector.extract_strided_slice %72 {offsets = [0, 32], sizes = [16, 32], strides = [1, 1]} : vector<16x128xf32> to vector<16x32xf32>
    %75 = vector.extract_strided_slice %72 {offsets = [0, 64], sizes = [16, 32], strides = [1, 1]} : vector<16x128xf32> to vector<16x32xf32>
    %cst_31 = arith.constant 2.000000e+00 : f32
    %76 = vector.broadcast %cst_31 : f32 to vector<16x32xf32>
    %77 = arith.mulf %76, %75 : vector<16x32xf32>
    %cst_32 = arith.constant 1.000000e+00 : f32
    %78 = vector.broadcast %cst_32 : f32 to vector<16x32xf32>
    %79 = arith.subf %77, %78 : vector<16x32xf32>
    %80 = vector.extract_strided_slice %72 {offsets = [0, 96], sizes = [16, 32], strides = [1, 1]} : vector<16x128xf32> to vector<16x32xf32>
    %81 = arith.mulf %74, %57 : vector<16x32xf32>
    %82 = arith.mulf %73, %79 : vector<16x32xf32>
    %83 = arith.addf %81, %82 : vector<16x32xf32>
    %84 = math.tanh %83 : vector<16x32xf32>
    %85 = arith.mulf %80, %84 : vector<16x32xf32>
    %86 = tpu.concatenate %55, %85, %53, %83 in 1 : vector<16x32xf32>, vector<16x32xf32>, vector<16x32xf32>, vector<16x32xf32> -> vector<16x128xf32>
    %c0_33 = arith.constant 0 : index
    %c0_34 = arith.constant 0 : index
    %87 = vector.load %arg7[%c0_33, %c0_34] : memref<16x128xf32, #tpu.memory_space<vmem>>, vector<16x128xf32>
    tpu.vector_store %arg7[%c0_33, %c0_34], %86 {strides = array<i32>} : memref<16x128xf32, #tpu.memory_space<vmem>>, vector<16x128xf32>,
    %88 = arith.truncf %85 : vector<16x32xf32> to vector<16x32xbf16>
    %c192 = arith.constant 192 : index
    %c0_35 = arith.constant 0 : index
    %89 = vector.load %arg4[%c192, %c0_35] : memref<288x128xbf16, #tpu.memory_space<vmem>>, vector<32x128xbf16>
    %cst_36 = arith.constant dense<0.000000e+00> : vector<16x128xf32>
    %90 = tpu.matmul %88, %89, %cst_36 {dimension_numbers = #tpu.dot_dimension_numbers<[1], [0], [0], [1], [0, 0, 1, 1], [], []>} : vector<16x32xbf16>, vector<32x128xbf16>, vector<16x128xf32> -> vector<16x128xf32>
    %c0_37 = arith.constant 0 : index
    %c0_38 = arith.constant 0 : index
    %91 = vector.load %arg2[%c0_37, %c0_38] : memref<16x32xf32, #tpu.memory_space<vmem>>, vector<16x32xf32>
    %92 = arith.truncf %91 : vector<16x32xf32> to vector<16x32xbf16>
    %c224 = arith.constant 224 : index
    %c0_39 = arith.constant 0 : index
    %93 = vector.load %arg4[%c224, %c0_39] : memref<288x128xbf16, #tpu.memory_space<vmem>>, vector<32x128xbf16>
    %cst_40 = arith.constant dense<0.000000e+00> : vector<16x128xf32>
    %94 = tpu.matmul %92, %93, %cst_40 {dimension_numbers = #tpu.dot_dimension_numbers<[1], [0], [0], [1], [0, 0, 1, 1], [], []>} : vector<16x32xbf16>, vector<32x128xbf16>, vector<16x128xf32> -> vector<16x128xf32>
    %95 = arith.addf %90, %94 : vector<16x128xf32>
    %96 = arith.truncf %25 : vector<16x32xf32> to vector<16x32xbf16>
    %c256 = arith.constant 256 : index
    %c0_41 = arith.constant 0 : index
    %97 = vector.load %arg4[%c256, %c0_41] : memref<288x128xbf16, #tpu.memory_space<vmem>>, vector<32x128xbf16>
    %cst_42 = arith.constant dense<0.000000e+00> : vector<16x128xf32>
    %98 = tpu.matmul %96, %97, %cst_42 {dimension_numbers = #tpu.dot_dimension_numbers<[1], [0], [0], [1], [0, 0, 1, 1], [], []>} : vector<16x32xbf16>, vector<32x128xbf16>, vector<16x128xf32> -> vector<16x128xf32>
    %99 = arith.addf %95, %98 : vector<16x128xf32>
    %c3 = arith.constant 3 : index
    %c0_43 = arith.constant 0 : index
    %100 = vector.load %arg5[%c3, %c0_43] : memref<4x128xf32, #tpu.memory_space<vmem>>, vector<1x128xf32>
    %101 = vector.broadcast %100 : vector<1x128xf32> to vector<16x128xf32>
    %102 = arith.addf %99, %101 : vector<16x128xf32>
    %c0_44 = arith.constant 0 : index
    %c0_45 = arith.constant 0 : index
    %103 = vector.load %arg6[%c0_44, %c0_45] : memref<16x128xf32, #tpu.memory_space<vmem>>, vector<16x128xf32>
    tpu.vector_store %arg6[%c0_44, %c0_45], %102 {strides = array<i32>} : memref<16x128xf32, #tpu.memory_space<vmem>>, vector<16x128xf32>,
    return
  }
  func.func @transform_0(%arg0: i32) -> (i32, i32) {
    %c0_i32 = arith.constant 0 : i32
    %c0_i32_0 = arith.constant 0 : i32
    return %arg0, %c0_i32 : i32, i32
  }
  func.func @transform_1(%arg0: i32) -> (i32, i32) {
    %c0_i32 = arith.constant 0 : i32
    %c0_i32_0 = arith.constant 0 : i32
    return %arg0, %c0_i32 : i32, i32
  }
  func.func @transform_2(%arg0: i32) -> (i32, i32) {
    %c0_i32 = arith.constant 0 : i32
    %c0_i32_0 = arith.constant 0 : i32
    return %arg0, %c0_i32 : i32, i32
  }
  func.func @transform_3(%arg0: i32) -> (i32, i32) {
    %c0_i32 = arith.constant 0 : i32
    %c0_i32_0 = arith.constant 0 : i32
    %c0_i32_1 = arith.constant 0 : i32
    return %c0_i32, %c0_i32_0 : i32, i32
  }
  func.func @transform_4(%arg0: i32) -> (i32, i32) {
    %c0_i32 = arith.constant 0 : i32
    %c0_i32_0 = arith.constant 0 : i32
    %c0_i32_1 = arith.constant 0 : i32
    return %c0_i32, %c0_i32_0 : i32, i32
  }
  func.func @transform_5(%arg0: i32) -> (i32, i32) {
    %c0_i32 = arith.constant 0 : i32
    %c0_i32_0 = arith.constant 0 : i32
    return %arg0, %c0_i32 : i32, i32
  }
  func.func @transform_6(%arg0: i32) -> (i32, i32) {
    %c0_i32 = arith.constant 0 : i32
    %c0_i32_0 = arith.constant 0 : i32
    return %arg0, %c0_i32 : i32, i32
  }
}

</mosaic_0001>

<llo_original>
// kernel: lstm_bot_forward.1
$region0: #{lstm_bot_forward.1}
  #allocation0 [shape = 'u32[]', space=smem, size = 0x4, offset = 0x4, fixed_abs, tag = 'smem constant byte address 0x4 - core index']
  #allocation1 [shape = 'u32[144,128]{1,0:T(1,128)}', space=vmem, size = 0x12000, scoped, tag = 'internal scratch']
  %s0 = inlined_call_operand.vmem [shape: f32[16,64], index: 0, kind: input, shape index: {}]
  %s1 = inlined_call_operand.vmem [shape: f32[16,32], index: 1, kind: input, shape index: {}]
  %s2 = inlined_call_operand.vmem [shape: f32[16,128], index: 2, kind: input, shape index: {}]
  %s3 = inlined_call_operand.hbm [shape: bf16[288,128], index: 3, kind: input, shape index: {}]
  %s4 = inlined_call_operand.vmem [shape: f32[4,128], index: 4, kind: input, shape index: {}]
  %s5 = inlined_call_operand.vmem [shape: f32[16,128], index: 5, kind: output, shape index: {0}]
  %s6 = inlined_call_operand.vmem [shape: f32[16,128], index: 6, kind: output, shape index: {1}]
  %7 = xla_tuple %s5, %s6
  %s8 = sld [smem:[#allocation0]]
  $region42: #{lstm_bot_forward.1} parent=0
    _
  %s10 = ssub.s32 1, %s8
  %s11 = scalar_select 0, %s10, %s8
  $region1: #{lstm_bot_forward.1} parent=0
    #allocation2 [shape = 'u8[73728]{0}', space=vmem, size = 0x12000, scoped, tag = 'input window, operand 3, single buffered']
    #allocation3 [shape = 's32[1]{0}', space=sflag, size = 0x4, scoped, tag = 'scoped memory for lstm_bot_forward.1']
    %12 = vsyncpa [#allocation3], 0
    // Predicated region
    $region2: #{lstm_bot_forward.1} parent=1 // pred_check
      _
    $region3: #{lstm_bot_forward.1} parent=1 // pred_check_branch
      %14 = sbr.rel (0) target = $region5
    $region4: #{lstm_bot_forward.1} parent=1 // pred_region
      _
    $region5: #{lstm_bot_forward.1} parent=1 // pred_fallthru
      _
    // Predicated region
    $region6: #{lstm_bot_forward.1} parent=1 // pred_check
      _
    $region7: #{lstm_bot_forward.1} parent=1 // pred_check_branch
      %16 = sbr.rel (0) target = $region9
    $region8: #{lstm_bot_forward.1} parent=1 // pred_region
      _
    $region9: #{lstm_bot_forward.1} parent=1 // pred_fallthru
      _
    // Predicated region
    $region10: #{lstm_bot_forward.1} parent=1 // pred_check
      _
    $region11: #{lstm_bot_forward.1} parent=1 // pred_check_branch
      %18 = sbr.rel (0) target = $region13
    $region12: #{lstm_bot_forward.1} parent=1 // pred_region
      _
    $region13: #{lstm_bot_forward.1} parent=1 // pred_fallthru
      _
    // Predicated region
    $region14: #{lstm_bot_forward.1} parent=1 // pred_check
      _
    $region15: #{lstm_bot_forward.1} parent=1 // pred_check_branch
      %20 = sbr.rel (0) target = $region17
    $region16: #{lstm_bot_forward.1} parent=1 // pred_region
      %s22 = ssub.s32 2304, 2304
      %23 = vsyncadd [#allocation3], %s22
      %s24 = sshll.u32 [#allocation2], 4
      %s25 = int_to_ptr.vmem [resolvable:$true] %s24
      %30 = dma.hbm_to_vmem [thread:$0]  %s3, 2304, %s25, [#allocation3], 64, 64, 4
    $region17: #{lstm_bot_forward.1} parent=1 // pred_fallthru
      _
    // Predicated region
    $region18: #{lstm_bot_forward.1} parent=1 // pred_check
      _
    $region19: #{lstm_bot_forward.1} parent=1 // pred_check_branch
      %32 = sbr.rel (0) target = $region21
    $region20: #{lstm_bot_forward.1} parent=1 // pred_region
      _
    $region21: #{lstm_bot_forward.1} parent=1 // pred_fallthru
      _
    // Predicated region
    $region22: #{lstm_bot_forward.1} parent=1 // pred_check
      _
    $region23: #{lstm_bot_forward.1} parent=1 // pred_check_branch
      %34 = sbr.rel (0) target = $region25
    $region24: #{lstm_bot_forward.1} parent=1 // pred_region
      %35 = dma.done [#allocation3], 2304
    $region25: #{lstm_bot_forward.1} parent=1 // pred_fallthru
      _
    %v37 = vld [vmem:[%s0] sm:$0xff]
    %v38 = vld [vmem:[%s0 + $0x8] sm:$0xff]
    %v39 = vpack.c.bf16 %v38, %v37
    %v40 = vld [vmem:[#allocation2] sm:$0xf]
    %v41 = vld [vmem:[#allocation2 + $0x4] sm:$0xf]
    %v42 = vld [vmem:[#allocation2 + $0x8] sm:$0xf]
    %v43 = vld [vmem:[#allocation2 + $0xc] sm:$0xf]
    %v44 = vld [vmem:[#allocation2 + $0x10] sm:$0xf]
    %v45 = vld [vmem:[#allocation2 + $0x14] sm:$0xf]
    %v46 = vld [vmem:[#allocation2 + $0x18] sm:$0xf]
    %v47 = vld [vmem:[#allocation2 + $0x1c] sm:$0xf]
    %v56 = vunpack.c.l.b16 %v40
    %v57 = vunpack.c.l.b16 %v41
    %v58 = vunpack.c.l.b16 %v42
    %v59 = vunpack.c.l.b16 %v43
    %v60 = vunpack.c.l.b16 %v44
    %v61 = vunpack.c.l.b16 %v45
    %v62 = vunpack.c.l.b16 %v46
    %v63 = vunpack.c.l.b16 %v47
    %v64 = vpack.c.b16 %v57, %v56
    %v65 = vpack.c.b16 %v59, %v58
    %v66 = vpack.c.b16 %v61, %v60
    %v67 = vpack.c.b16 %v63, %v62
    %vm72 = vcmask 523264
    %v74 = vsel %vm72, %v39, 0
    %76 = vmatprep.subr.bf16.mxu0 0
    %77 = vmatpush1.bf16.msra.mxu0 %v64
    %78 = vmatprep.subr.bf16.mxu0 0
    %79 = vmatpush1.bf16.msra.mxu0 %v65
    %80 = vmatprep.subr.bf16.mxu0 0
    %81 = vmatpush1.bf16.msra.mxu0 %v66
    %82 = vmatprep.subr.bf16.mxu0 0
    %83 = vmatpush1.bf16.msra.mxu0 %v67
    %84 = vmatprep.subr.bf16.mxu0 0
    %85 = vmatpush1.bf16.msra.mxu0 0
    %86 = vmatprep.subr.bf16.mxu0 0
    %87 = vmatpush1.bf16.msra.mxu0 0
    %88 = vmatprep.subr.bf16.mxu0 0
    %89 = vmatpush1.bf16.msra.mxu0 0
    %90 = vmatprep.subr.bf16.mxu0 0
    %91 = vmatpush1.bf16.msra.mxu0 0
    %92 = vmatprep.subr.bf16.mxu0 0
    %93 = vmatpush1.bf16.msra.mxu0 0
    %94 = vmatprep.subr.bf16.mxu0 0
    %95 = vmatpush1.bf16.msra.mxu0 0
    %96 = vmatprep.subr.bf16.mxu0 0
    %97 = vmatpush1.bf16.msra.mxu0 0
    %98 = vmatprep.subr.bf16.mxu0 0
    %99 = vmatpush1.bf16.msra.mxu0 0
    %100 = vmatprep.subr.bf16.mxu0 0
    %101 = vmatpush1.bf16.msra.mxu0 0
    %102 = vmatprep.subr.bf16.mxu0 0
    %103 = vmatpush1.bf16.msra.mxu0 0
    %104 = vmatprep.subr.bf16.mxu0 0
    %105 = vmatpush1.bf16.msra.mxu0 0
    %106 = vmatprep.subr.bf16.mxu0 0
    %107 = vmatpush1.bf16.msra.mxu0 0
    %108 = vmatprep.mubr.bf16.mxu0 0
    %109 = vmatmul.mubr.bf16.gmra.mrb[0].mxu0 %v74
    %v110 = vpop.f32.mrb[0].mxu0
    %v111 = vadd.f32 0.0, %v110
    %v112 = vpop.f32.mrb[0].mxu0
    %v113 = vpop.f32.mrb[0].mxu0
    %v114 = vadd.f32 0.0, %v113
    %v115 = vpop.f32.mrb[0].mxu0
    %116 = vdwg.mxu0
    %v117 = vld [vmem:[%s4] sm:$0x1]
    %v118 = vlaneseq
    %v119 = vshrl.u32 %v118, 7
    %v120 = vsub.s32 0, %v119
    %v121 = vrot.slane %v117, %v120
    %v122 = vadd.f32 %v111, %v121
    %v123 = vadd.f32 %v114, %v121
    %vm124 = vcmask 261120
    %v125 = vsel %vm124, %v122, 0.0
    %126 = vadd.xlane.f32.xlu0 %v125
    %v127 = vpop.xlane.xlu0 %126
    %v128 = vsel %vm124, %v123, 0.0
    %129 = vadd.xlane.f32.xlu0 %v128
    %v130 = vpop.xlane.xlu0 %129
    %v131 = vrcp.pop 32.0
    %v132 = vmul.f32 %v127, %v131
    %v133 = vmul.f32 %v130, %v131
    %v134 = vsub.f32 %v122, %v132
    %v135 = vsub.f32 %v123, %v133
    %v136 = vmul.f32 %v134, %v134
    %v137 = vmul.f32 %v135, %v135
    %v138 = vsel %vm124, %v136, 0.0
    %139 = vadd.xlane.f32.xlu0 %v138
    %v140 = vpop.xlane.xlu0 %139
    %v141 = vsel %vm124, %v137, 0.0
    %142 = vadd.xlane.f32.xlu0 %v141
    %v143 = vpop.xlane.xlu0 %142
    %v144 = vmul.f32 %v140, %v131
    %v145 = vmul.f32 %v143, %v131
    %v146 = vadd.f32 %v144, 1e-05
    %v147 = vadd.f32 %v145, 1e-05
    %v148 = vrsqrt.pop %v146
    %v149 = vrsqrt.pop %v147
    %v150 = vmul.f32 %v134, %v148
    %v151 = vmul.f32 %v135, %v149
    %v152 = vld [vmem:[%s2] sm:$0xff]
    %v153 = vld [vmem:[%s2 + $0x8] sm:$0xff]
    %v154 = vld [vmem:[#allocation2 + $0x20] sm:$0xf]
    %v155 = vld [vmem:[#allocation2 + $0x24] sm:$0xf]
    %v156 = vld [vmem:[#allocation2 + $0x28] sm:$0xf]
    %v157 = vld [vmem:[#allocation2 + $0x2c] sm:$0xf]
    %v158 = vld [vmem:[#allocation2 + $0x30] sm:$0xf]
    %v159 = vld [vmem:[#allocation2 + $0x34] sm:$0xf]
    %v160 = vld [vmem:[#allocation2 + $0x38] sm:$0xf]
    %v161 = vld [vmem:[#allocation2 + $0x3c] sm:$0xf]
    %v162 = vpack.c.bf16 %v151, %v150
    %v163 = vpack.c.bf16 %v153, %v152
    %v168 = vunpack.c.l.b16 %v158
    %v169 = vunpack.c.l.b16 %v159
    %v170 = vunpack.c.l.b16 %v160
    %v171 = vunpack.c.l.b16 %v161
    %v172 = vpack.c.b16 %v169, %v168
    %v173 = vpack.c.b16 %v171, %v170
    %v177 = vsel %vm124, %v163, 0
    %179 = vmatprep.subr.bf16.mxu0 0
    %180 = vmatpush1.bf16.msra.mxu0 %v172
    %181 = vmatprep.subr.bf16.mxu0 0
    %182 = vmatpush1.bf16.msra.mxu0 %v173
    %183 = vmatprep.subr.bf16.mxu0 0
    %184 = vmatpush1.bf16.msra.mxu0 0
    %185 = vmatprep.subr.bf16.mxu0 0
    %186 = vmatpush1.bf16.msra.mxu0 0
    %187 = vmatprep.subr.bf16.mxu0 0
    %188 = vmatpush1.bf16.msra.mxu0 0
    %189 = vmatprep.subr.bf16.mxu0 0
    %190 = vmatpush1.bf16.msra.mxu0 0
    %191 = vmatprep.subr.bf16.mxu0 0
    %192 = vmatpush1.bf16.msra.mxu0 0
    %193 = vmatprep.subr.bf16.mxu0 0
    %194 = vmatpush1.bf16.msra.mxu0 0
    %195 = vmatprep.subr.bf16.mxu0 0
    %196 = vmatpush1.bf16.msra.mxu0 0
    %197 = vmatprep.subr.bf16.mxu0 0
    %198 = vmatpush1.bf16.msra.mxu0 0
    %199 = vmatprep.subr.bf16.mxu0 0
    %200 = vmatpush1.bf16.msra.mxu0 0
    %201 = vmatprep.subr.bf16.mxu0 0
    %202 = vmatpush1.bf16.msra.mxu0 0
    %203 = vmatprep.subr.bf16.mxu0 0
    %204 = vmatpush1.bf16.msra.mxu0 0
    %205 = vmatprep.subr.bf16.mxu0 0
    %206 = vmatpush1.bf16.msra.mxu0 0
    %207 = vmatprep.subr.bf16.mxu0 0
    %208 = vmatpush1.bf16.msra.mxu0 0
    %209 = vmatprep.subr.bf16.mxu0 0
    %210 = vmatpush1.bf16.msra.mxu0 0
    %211 = vmatprep.mubr.bf16.mxu0 0
    %212 = vmatmul.mubr.bf16.gmra.mrb[0].mxu0 %v177
    %v213 = vpop.f32.mrb[0].mxu0
    %v214 = vadd.f32 0.0, %v213
    %v215 = vpop.f32.mrb[0].mxu0
    %v216 = vpop.f32.mrb[0].mxu0
    %v217 = vadd.f32 0.0, %v216
    %v218 = vpop.f32.mrb[0].mxu0
    %219 = vdwg.mxu0
    %v224 = vunpack.c.l.b16 %v154
    %v225 = vunpack.c.l.b16 %v155
    %v226 = vunpack.c.l.b16 %v156
    %v227 = vunpack.c.l.b16 %v157
    %v228 = vpack.c.b16 %v225, %v224
    %v229 = vpack.c.b16 %v227, %v226
    %v233 = vsel %vm124, %v162, 0
    %235 = vmatprep.subr.bf16.mxu0 0
    %236 = vmatpush1.bf16.msra.mxu0 %v228
    %237 = vmatprep.subr.bf16.mxu0 0
    %238 = vmatpush1.bf16.msra.mxu0 %v229
    %239 = vmatprep.subr.bf16.mxu0 0
    %240 = vmatpush1.bf16.msra.mxu0 0
    %241 = vmatprep.subr.bf16.mxu0 0
    %242 = vmatpush1.bf16.msra.mxu0 0
    %243 = vmatprep.subr.bf16.mxu0 0
    %244 = vmatpush1.bf16.msra.mxu0 0
    %245 = vmatprep.subr.bf16.mxu0 0
    %246 = vmatpush1.bf16.msra.mxu0 0
    %247 = vmatprep.subr.bf16.mxu0 0
    %248 = vmatpush1.bf16.msra.mxu0 0
    %249 = vmatprep.subr.bf16.mxu0 0
    %250 = vmatpush1.bf16.msra.mxu0 0
    %251 = vmatprep.subr.bf16.mxu0 0
    %252 = vmatpush1.bf16.msra.mxu0 0
    %253 = vmatprep.subr.bf16.mxu0 0
    %254 = vmatpush1.bf16.msra.mxu0 0
    %255 = vmatprep.subr.bf16.mxu0 0
    %256 = vmatpush1.bf16.msra.mxu0 0
    %257 = vmatprep.subr.bf16.mxu0 0
    %258 = vmatpush1.bf16.msra.mxu0 0
    %259 = vmatprep.subr.bf16.mxu0 0
    %260 = vmatpush1.bf16.msra.mxu0 0
    %261 = vmatprep.subr.bf16.mxu0 0
    %262 = vmatpush1.bf16.msra.mxu0 0
    %263 = vmatprep.subr.bf16.mxu0 0
    %264 = vmatpush1.bf16.msra.mxu0 0
    %265 = vmatprep.subr.bf16.mxu0 0
    %266 = vmatpush1.bf16.msra.mxu0 0
    %267 = vmatprep.mubr.bf16.mxu0 0
    %268 = vmatmul.mubr.bf16.gmra.mrb[0].mxu0 %v233
    %v269 = vpop.f32.mrb[0].mxu0
    %v270 = vadd.f32 %v214, %v269
    %v271 = vpop.f32.mrb[0].mxu0
    %v272 = vpop.f32.mrb[0].mxu0
    %v273 = vadd.f32 %v217, %v272
    %v274 = vpop.f32.mrb[0].mxu0
    %275 = vdwg.mxu0
    %v276 = vld [vmem:[%s4 + $0x1] sm:$0x1]
    %v277 = vlaneseq
    %v278 = vshrl.u32 %v277, 7
    %v279 = vsub.s32 0, %v278
    %v280 = vrot.slane %v276, %v279
    %v281 = vadd.f32 %v270, %v280
    %v282 = vadd.f32 %v273, %v280
    %v283 = vxor.u32 %v281, 2147483648
    %v284 = vxor.u32 %v282, 2147483648
    %v285 = vmul.f32 %v283, 1.442695
    %v286 = vpow.pop %v285
    %v287 = vmul.f32 %v284, 1.442695
    %v288 = vpow.pop %v287
    %v289 = vadd.f32 %v286, 1.0
    %v290 = vadd.f32 %v288, 1.0
    %v291 = vrcp.pop %v289
    %v292 = vmul.f32 1.0, %v291
    %v293 = vrcp.pop %v290
    %v294 = vmul.f32 1.0, %v293
    %v295 = vmul.f32 %v292, 2.0
    %v296 = vmul.f32 %v294, 2.0
    %v297 = vsub.f32 %v295, 1.0
    %v298 = vsub.f32 %v296, 1.0
    %301 = vrot.lane.b32.xlu0 %v152, 96
    %v302 = vpop.permute.xlu0 %301
    %303 = vrot.lane.b32.xlu0 %v153, 96
    %v304 = vpop.permute.xlu0 %303
    %v307 = vmul.f32 %v292, %v302
    %v308 = vmul.f32 %v294, %v304
    %311 = vrot.lane.b32.xlu0 %v297, 64
    %v312 = vpop.permute.xlu0 %311
    %313 = vrot.lane.b32.xlu0 %v298, 64
    %v314 = vpop.permute.xlu0 %313
    %v317 = vmul.f32 %v292, %v312
    %v318 = vmul.f32 %v294, %v314
    %321 = vrot.lane.b32.xlu0 %v317, 32
    %v322 = vpop.permute.xlu0 %321
    %323 = vrot.lane.b32.xlu0 %v318, 32
    %v324 = vpop.permute.xlu0 %323
    %v327 = vadd.f32 %v307, %v322
    %v328 = vadd.f32 %v308, %v324
    %v329 = vtanh.pop %v327
    %v330 = vtanh.pop %v328
    %333 = vrot.lane.b32.xlu0 %v329, 64
    %v334 = vpop.permute.xlu0 %333
    %335 = vrot.lane.b32.xlu0 %v330, 64
    %v336 = vpop.permute.xlu0 %335
    %v339 = vmul.f32 %v292, %v334
    %v340 = vmul.f32 %v294, %v336
    %v341 = vld [vmem:[#allocation2 + $0x40] sm:$0xf]
    %v342 = vld [vmem:[#allocation2 + $0x44] sm:$0xf]
    %v343 = vld [vmem:[#allocation2 + $0x48] sm:$0xf]
    %v344 = vld [vmem:[#allocation2 + $0x4c] sm:$0xf]
    %v345 = vld [vmem:[#allocation2 + $0x50] sm:$0xf]
    %v346 = vld [vmem:[#allocation2 + $0x54] sm:$0xf]
    %v347 = vld [vmem:[#allocation2 + $0x58] sm:$0xf]
    %v348 = vld [vmem:[#allocation2 + $0x5c] sm:$0xf]
    %v349 = vpack.c.bf16 %v340, %v339
    %351 = vrot.lane.b32.xlu0 %v163, 96
    %v352 = vpop.permute.xlu0 %351
    %v357 = vunpack.c.l.b16 %v345
    %v358 = vunpack.c.l.b16 %v346
    %v359 = vunpack.c.l.b16 %v347
    %v360 = vunpack.c.l.b16 %v348
    %v361 = vpack.c.b16 %v358, %v357
    %v362 = vpack.c.b16 %v360, %v359
    %v366 = vsel %vm124, %v352, 0
    %368 = vmatprep.subr.bf16.mxu0 0
    %369 = vmatpush1.bf16.msra.mxu0 %v361
    %370 = vmatprep.subr.bf16.mxu0 0
    %371 = vmatpush1.bf16.msra.mxu0 %v362
    %372 = vmatprep.subr.bf16.mxu0 0
    %373 = vmatpush1.bf16.msra.mxu0 0
    %374 = vmatprep.subr.bf16.mxu0 0
    %375 = vmatpush1.bf16.msra.mxu0 0
    %376 = vmatprep.subr.bf16.mxu0 0
    %377 = vmatpush1.bf16.msra.mxu0 0
    %378 = vmatprep.subr.bf16.mxu0 0
    %379 = vmatpush1.bf16.msra.mxu0 0
    %380 = vmatprep.subr.bf16.mxu0 0
    %381 = vmatpush1.bf16.msra.mxu0 0
    %382 = vmatprep.subr.bf16.mxu0 0
    %383 = vmatpush1.bf16.msra.mxu0 0
    %384 = vmatprep.subr.bf16.mxu0 0
    %385 = vmatpush1.bf16.msra.mxu0 0
    %386 = vmatprep.subr.bf16.mxu0 0
    %387 = vmatpush1.bf16.msra.mxu0 0
    %388 = vmatprep.subr.bf16.mxu0 0
    %389 = vmatpush1.bf16.msra.mxu0 0
    %390 = vmatprep.subr.bf16.mxu0 0
    %391 = vmatpush1.bf16.msra.mxu0 0
    %392 = vmatprep.subr.bf16.mxu0 0
    %393 = vmatpush1.bf16.msra.mxu0 0
    %394 = vmatprep.subr.bf16.mxu0 0
    %395 = vmatpush1.bf16.msra.mxu0 0
    %396 = vmatprep.subr.bf16.mxu0 0
    %397 = vmatpush1.bf16.msra.mxu0 0
    %398 = vmatprep.subr.bf16.mxu0 0
    %399 = vmatpush1.bf16.msra.mxu0 0
    %400 = vmatprep.mubr.bf16.mxu0 0
    %401 = vmatmul.mubr.bf16.gmra.mrb[0].mxu0 %v366
    %v402 = vpop.f32.mrb[0].mxu0
    %v403 = vadd.f32 0.0, %v402
    %v404 = vpop.f32.mrb[0].mxu0
    %v405 = vpop.f32.mrb[0].mxu0
    %v406 = vadd.f32 0.0, %v405
    %v407 = vpop.f32.mrb[0].mxu0
    %408 = vdwg.mxu0
    %410 = vrot.lane.b32.xlu0 %v349, 32
    %v411 = vpop.permute.xlu0 %410
    %v416 = vunpack.c.l.b16 %v341
    %v417 = vunpack.c.l.b16 %v342
    %v418 = vunpack.c.l.b16 %v343
    %v419 = vunpack.c.l.b16 %v344
    %v420 = vpack.c.b16 %v417, %v416
    %v421 = vpack.c.b16 %v419, %v418
    %v425 = vsel %vm124, %v411, 0
    %427 = vmatprep.subr.bf16.mxu0 0
    %428 = vmatpush1.bf16.msra.mxu0 %v420
    %429 = vmatprep.subr.bf16.mxu0 0
    %430 = vmatpush1.bf16.msra.mxu0 %v421
    %431 = vmatprep.subr.bf16.mxu0 0
    %432 = vmatpush1.bf16.msra.mxu0 0
    %433 = vmatprep.subr.bf16.mxu0 0
    %434 = vmatpush1.bf16.msra.mxu0 0
    %435 = vmatprep.subr.bf16.mxu0 0
    %436 = vmatpush1.bf16.msra.mxu0 0
    %437 = vmatprep.subr.bf16.mxu0 0
    %438 = vmatpush1.bf16.msra.mxu0 0
    %439 = vmatprep.subr.bf16.mxu0 0
    %440 = vmatpush1.bf16.msra.mxu0 0
    %441 = vmatprep.subr.bf16.mxu0 0
    %442 = vmatpush1.bf16.msra.mxu0 0
    %443 = vmatprep.subr.bf16.mxu0 0
    %444 = vmatpush1.bf16.msra.mxu0 0
    %445 = vmatprep.subr.bf16.mxu0 0
    %446 = vmatpush1.bf16.msra.mxu0 0
    %447 = vmatprep.subr.bf16.mxu0 0
    %448 = vmatpush1.bf16.msra.mxu0 0
    %449 = vmatprep.subr.bf16.mxu0 0
    %450 = vmatpush1.bf16.msra.mxu0 0
    %451 = vmatprep.subr.bf16.mxu0 0
    %452 = vmatpush1.bf16.msra.mxu0 0
    %453 = vmatprep.subr.bf16.mxu0 0
    %454 = vmatpush1.bf16.msra.mxu0 0
    %455 = vmatprep.subr.bf16.mxu0 0
    %456 = vmatpush1.bf16.msra.mxu0 0
    %457 = vmatprep.subr.bf16.mxu0 0
    %458 = vmatpush1.bf16.msra.mxu0 0
    %459 = vmatprep.mubr.bf16.mxu0 0
    %460 = vmatmul.mubr.bf16.gmra.mrb[0].mxu0 %v425
    %v461 = vpop.f32.mrb[0].mxu0
    %v462 = vadd.f32 %v403, %v461
    %v463 = vpop.f32.mrb[0].mxu0
    %v464 = vpop.f32.mrb[0].mxu0
    %v465 = vadd.f32 %v406, %v464
    %v466 = vpop.f32.mrb[0].mxu0
    %467 = vdwg.mxu0
    %v468 = vld [vmem:[%s4 + $0x2] sm:$0x1]
    %v469 = vlaneseq
    %v470 = vshrl.u32 %v469, 7
    %v471 = vsub.s32 0, %v470
    %v472 = vrot.slane %v468, %v471
    %v473 = vadd.f32 %v462, %v472
    %v474 = vadd.f32 %v465, %v472
    %v475 = vxor.u32 %v473, 2147483648
    %v476 = vxor.u32 %v474, 2147483648
    %v477 = vmul.f32 %v475, 1.442695
    %v478 = vpow.pop %v477
    %v479 = vmul.f32 %v476, 1.442695
    %v480 = vpow.pop %v479
    %v481 = vadd.f32 %v478, 1.0
    %v482 = vadd.f32 %v480, 1.0
    %v483 = vrcp.pop %v481
    %v484 = vmul.f32 1.0, %v483
    %v485 = vrcp.pop %v482
    %v486 = vmul.f32 1.0, %v485
    %v487 = vmul.f32 %v484, 2.0
    %v488 = vmul.f32 %v486, 2.0
    %v489 = vsub.f32 %v487, 1.0
    %v490 = vsub.f32 %v488, 1.0
    %491 = vrot.lane.b32.xlu0 %v152, 64
    %v492 = vpop.permute.xlu0 %491
    %493 = vrot.lane.b32.xlu0 %v153, 64
    %v494 = vpop.permute.xlu0 %493
    %v497 = vmul.f32 %v484, %v492
    %v498 = vmul.f32 %v486, %v494
    %501 = vrot.lane.b32.xlu0 %v489, 64
    %v502 = vpop.permute.xlu0 %501
    %503 = vrot.lane.b32.xlu0 %v490, 64
    %v504 = vpop.permute.xlu0 %503
    %v507 = vmul.f32 %v484, %v502
    %v508 = vmul.f32 %v486, %v504
    %511 = vrot.lane.b32.xlu0 %v507, 32
    %v512 = vpop.permute.xlu0 %511
    %513 = vrot.lane.b32.xlu0 %v508, 32
    %v514 = vpop.permute.xlu0 %513
    %v517 = vadd.f32 %v497, %v512
    %v518 = vadd.f32 %v498, %v514
    %v519 = vtanh.pop %v517
    %v520 = vtanh.pop %v518
    %523 = vrot.lane.b32.xlu0 %v519, 64
    %v524 = vpop.permute.xlu0 %523
    %525 = vrot.lane.b32.xlu0 %v520, 64
    %v526 = vpop.permute.xlu0 %525
    %v529 = vmul.f32 %v484, %v524
    %v530 = vmul.f32 %v486, %v526
    %533 = vrot.lane.b32.xlu0 %v339, 32
    %v534 = vpop.permute.xlu0 %533
    %535 = vrot.lane.b32.xlu0 %v340, 32
    %v536 = vpop.permute.xlu0 %535
    %541 = vrot.lane.b32.xlu0 %v529, 64
    %v542 = vpop.permute.xlu0 %541
    %543 = vrot.lane.b32.xlu0 %v530, 64
    %v544 = vpop.permute.xlu0 %543
    %549 = vrot.lane.b32.xlu0 %v327, 32
    %v550 = vpop.permute.xlu0 %549
    %551 = vrot.lane.b32.xlu0 %v328, 32
    %v552 = vpop.permute.xlu0 %551
    %557 = vrot.lane.b32.xlu0 %v517, 64
    %v558 = vpop.permute.xlu0 %557
    %559 = vrot.lane.b32.xlu0 %v518, 64
    %v560 = vpop.permute.xlu0 %559
    %v563 = vsel %vm124, %v534, %v542
    %v564 = vsel %vm124, %v536, %v544
    %v565 = vsel %vm72, %v563, %v550
    %v566 = vsel %vm72, %v564, %v552
    %vm567 = vcmask 785408
    %v568 = vsel %vm567, %v565, %v558
    %v569 = vsel %vm567, %v566, %v560
    %570 = vst [vmem:[%s6] sm:$0xff] %v568
    %571 = vst [vmem:[%s6 + $0x8] sm:$0xff] %v569
    %v572 = vpack.c.bf16 %v530, %v529
    %v573 = vld [vmem:[#allocation2 + $0x60] sm:$0xf]
    %v574 = vld [vmem:[#allocation2 + $0x64] sm:$0xf]
    %v575 = vld [vmem:[#allocation2 + $0x68] sm:$0xf]
    %v576 = vld [vmem:[#allocation2 + $0x6c] sm:$0xf]
    %v577 = vld [vmem:[%s1] sm:$0xff]
    %v578 = vld [vmem:[%s1 + $0x8] sm:$0xff]
    %v579 = vpack.c.bf16 %v578, %v577
    %v580 = vld [vmem:[#allocation2 + $0x70] sm:$0xf]
    %v581 = vld [vmem:[#allocation2 + $0x74] sm:$0xf]
    %v582 = vld [vmem:[#allocation2 + $0x78] sm:$0xf]
    %v583 = vld [vmem:[#allocation2 + $0x7c] sm:$0xf]
    %v588 = vunpack.c.l.b16 %v580
    %v589 = vunpack.c.l.b16 %v581
    %v590 = vunpack.c.l.b16 %v582
    %v591 = vunpack.c.l.b16 %v583
    %v592 = vpack.c.b16 %v589, %v588
    %v593 = vpack.c.b16 %v591, %v590
    %v597 = vsel %vm124, %v579, 0
    %599 = vmatprep.subr.bf16.mxu0 0
    %600 = vmatpush1.bf16.msra.mxu0 %v592
    %601 = vmatprep.subr.bf16.mxu0 0
    %602 = vmatpush1.bf16.msra.mxu0 %v593
    %603 = vmatprep.subr.bf16.mxu0 0
    %604 = vmatpush1.bf16.msra.mxu0 0
    %605 = vmatprep.subr.bf16.mxu0 0
    %606 = vmatpush1.bf16.msra.mxu0 0
    %607 = vmatprep.subr.bf16.mxu0 0
    %608 = vmatpush1.bf16.msra.mxu0 0
    %609 = vmatprep.subr.bf16.mxu0 0
    %610 = vmatpush1.bf16.msra.mxu0 0
    %611 = vmatprep.subr.bf16.mxu0 0
    %612 = vmatpush1.bf16.msra.mxu0 0
    %613 = vmatprep.subr.bf16.mxu0 0
    %614 = vmatpush1.bf16.msra.mxu0 0
    %615 = vmatprep.subr.bf16.mxu0 0
    %616 = vmatpush1.bf16.msra.mxu0 0
    %617 = vmatprep.subr.bf16.mxu0 0
    %618 = vmatpush1.bf16.msra.mxu0 0
    %619 = vmatprep.subr.bf16.mxu0 0
    %620 = vmatpush1.bf16.msra.mxu0 0
    %621 = vmatprep.subr.bf16.mxu0 0
    %622 = vmatpush1.bf16.msra.mxu0 0
    %623 = vmatprep.subr.bf16.mxu0 0
    %624 = vmatpush1.bf16.msra.mxu0 0
    %625 = vmatprep.subr.bf16.mxu0 0
    %626 = vmatpush1.bf16.msra.mxu0 0
    %627 = vmatprep.subr.bf16.mxu0 0
    %628 = vmatpush1.bf16.msra.mxu0 0
    %629 = vmatprep.subr.bf16.mxu0 0
    %630 = vmatpush1.bf16.msra.mxu0 0
    %631 = vmatprep.mubr.bf16.mxu0 0
    %632 = vmatmul.mubr.bf16.gmra.mrb[0].mxu0 %v597
    %v633 = vpop.f32.mrb[0].mxu0
    %v634 = vadd.f32 0.0, %v633
    %v635 = vpop.f32.mrb[0].mxu0
    %v636 = vpop.f32.mrb[0].mxu0
    %v637 = vadd.f32 0.0, %v636
    %v638 = vpop.f32.mrb[0].mxu0
    %639 = vdwg.mxu0
    %641 = vrot.lane.b32.xlu0 %v572, 32
    %v642 = vpop.permute.xlu0 %641
    %v647 = vunpack.c.l.b16 %v573
    %v648 = vunpack.c.l.b16 %v574
    %v649 = vunpack.c.l.b16 %v575
    %v650 = vunpack.c.l.b16 %v576
    %v651 = vpack.c.b16 %v648, %v647
    %v652 = vpack.c.b16 %v650, %v649
    %v656 = vsel %vm124, %v642, 0
    %658 = vmatprep.subr.bf16.mxu0 0
    %659 = vmatpush1.bf16.msra.mxu0 %v651
    %660 = vmatprep.subr.bf16.mxu0 0
    %661 = vmatpush1.bf16.msra.mxu0 %v652
    %662 = vmatprep.subr.bf16.mxu0 0
    %663 = vmatpush1.bf16.msra.mxu0 0
    %664 = vmatprep.subr.bf16.mxu0 0
    %665 = vmatpush1.bf16.msra.mxu0 0
    %666 = vmatprep.subr.bf16.mxu0 0
    %667 = vmatpush1.bf16.msra.mxu0 0
    %668 = vmatprep.subr.bf16.mxu0 0
    %669 = vmatpush1.bf16.msra.mxu0 0
    %670 = vmatprep.subr.bf16.mxu0 0
    %671 = vmatpush1.bf16.msra.mxu0 0
    %672 = vmatprep.subr.bf16.mxu0 0
    %673 = vmatpush1.bf16.msra.mxu0 0
    %674 = vmatprep.subr.bf16.mxu0 0
    %675 = vmatpush1.bf16.msra.mxu0 0
    %676 = vmatprep.subr.bf16.mxu0 0
    %677 = vmatpush1.bf16.msra.mxu0 0
    %678 = vmatprep.subr.bf16.mxu0 0
    %679 = vmatpush1.bf16.msra.mxu0 0
    %680 = vmatprep.subr.bf16.mxu0 0
    %681 = vmatpush1.bf16.msra.mxu0 0
    %682 = vmatprep.subr.bf16.mxu0 0
    %683 = vmatpush1.bf16.msra.mxu0 0
    %684 = vmatprep.subr.bf16.mxu0 0
    %685 = vmatpush1.bf16.msra.mxu0 0
    %686 = vmatprep.subr.bf16.mxu0 0
    %687 = vmatpush1.bf16.msra.mxu0 0
    %688 = vmatprep.subr.bf16.mxu0 0
    %689 = vmatpush1.bf16.msra.mxu0 0
    %690 = vmatprep.mubr.bf16.mxu0 0
    %691 = vmatmul.mubr.bf16.gmra.mrb[0].mxu0 %v656
    %v692 = vpop.f32.mrb[0].mxu0
    %v693 = vadd.f32 %v634, %v692
    %v694 = vpop.f32.mrb[0].mxu0
    %v695 = vpop.f32.mrb[0].mxu0
    %v696 = vadd.f32 %v637, %v695
    %v697 = vpop.f32.mrb[0].mxu0
    %698 = vdwg.mxu0
    %v699 = vld [vmem:[#allocation2 + $0x80] sm:$0xf]
    %v700 = vld [vmem:[#allocation2 + $0x84] sm:$0xf]
    %v701 = vld [vmem:[#allocation2 + $0x88] sm:$0xf]
    %v702 = vld [vmem:[#allocation2 + $0x8c] sm:$0xf]
    %v707 = vunpack.c.l.b16 %v699
    %v708 = vunpack.c.l.b16 %v700
    %v709 = vunpack.c.l.b16 %v701
    %v710 = vunpack.c.l.b16 %v702
    %v711 = vpack.c.b16 %v708, %v707
    %v712 = vpack.c.b16 %v710, %v709
    %715 = vmatprep.subr.bf16.mxu0 0
    %716 = vmatpush1.bf16.msra.mxu0 %v711
    %717 = vmatprep.subr.bf16.mxu0 0
    %718 = vmatpush1.bf16.msra.mxu0 %v712
    %719 = vmatprep.subr.bf16.mxu0 0
    %720 = vmatpush1.bf16.msra.mxu0 0
    %721 = vmatprep.subr.bf16.mxu0 0
    %722 = vmatpush1.bf16.msra.mxu0 0
    %723 = vmatprep.subr.bf16.mxu0 0
    %724 = vmatpush1.bf16.msra.mxu0 0
    %725 = vmatprep.subr.bf16.mxu0 0
    %726 = vmatpush1.bf16.msra.mxu0 0
    %727 = vmatprep.subr.bf16.mxu0 0
    %728 = vmatpush1.bf16.msra.mxu0 0
    %729 = vmatprep.subr.bf16.mxu0 0
    %730 = vmatpush1.bf16.msra.mxu0 0
    %731 = vmatprep.subr.bf16.mxu0 0
    %732 = vmatpush1.bf16.msra.mxu0 0
    %733 = vmatprep.subr.bf16.mxu0 0
    %734 = vmatpush1.bf16.msra.mxu0 0
    %735 = vmatprep.subr.bf16.mxu0 0
    %736 = vmatpush1.bf16.msra.mxu0 0
    %737 = vmatprep.subr.bf16.mxu0 0
    %738 = vmatpush1.bf16.msra.mxu0 0
    %739 = vmatprep.subr.bf16.mxu0 0
    %740 = vmatpush1.bf16.msra.mxu0 0
    %741 = vmatprep.subr.bf16.mxu0 0
    %742 = vmatpush1.bf16.msra.mxu0 0
    %743 = vmatprep.subr.bf16.mxu0 0
    %744 = vmatpush1.bf16.msra.mxu0 0
    %745 = vmatprep.subr.bf16.mxu0 0
    %746 = vmatpush1.bf16.msra.mxu0 0
    %747 = vmatprep.mubr.bf16.mxu0 0
    %748 = vmatmul.mubr.bf16.gmra.mrb[0].mxu0 %v233
    %v749 = vpop.f32.mrb[0].mxu0
    %v750 = vadd.f32 0.0, %v749
    %v751 = vpop.f32.mrb[0].mxu0
    %v752 = vpop.f32.mrb[0].mxu0
    %v753 = vadd.f32 0.0, %v752
    %v754 = vpop.f32.mrb[0].mxu0
    %755 = vdwg.mxu0
    %v756 = vadd.f32 %v693, %v750
    %v757 = vadd.f32 %v696, %v753
    %v758 = vld [vmem:[%s4 + $0x3] sm:$0x1]
    %v759 = vlaneseq
    %v760 = vshrl.u32 %v759, 7
    %v761 = vsub.s32 0, %v760
    %v762 = vrot.slane %v758, %v761
    %v763 = vadd.f32 %v756, %v762
    %v764 = vadd.f32 %v757, %v762
    %765 = vst [vmem:[%s5] sm:$0xff] %v763
    %766 = vst [vmem:[%s5 + $0x8] sm:$0xff] %v764
    // Predicated region
    $region26: #{lstm_bot_forward.1} parent=1 // pred_check
      _
    $region27: #{lstm_bot_forward.1} parent=1 // pred_check_branch
      %768 = sbr.rel (0) target = $region29
    $region28: #{lstm_bot_forward.1} parent=1 // pred_region
      _
    $region29: #{lstm_bot_forward.1} parent=1 // pred_fallthru
      _
    // Predicated region
    $region30: #{lstm_bot_forward.1} parent=1 // pred_check
      _
    $region31: #{lstm_bot_forward.1} parent=1 // pred_check_branch
      %770 = sbr.rel (0) target = $region33
    $region32: #{lstm_bot_forward.1} parent=1 // pred_region
      _
    $region33: #{lstm_bot_forward.1} parent=1 // pred_fallthru
      _
    // Predicated region
    $region34: #{lstm_bot_forward.1} parent=1 // pred_check
      _
    $region35: #{lstm_bot_forward.1} parent=1 // pred_check_branch
      %772 = sbr.rel (0) target = $region37
    $region36: #{lstm_bot_forward.1} parent=1 // pred_region
      _
    $region37: #{lstm_bot_forward.1} parent=1 // pred_fallthru
      _
    // Predicated region
    $region38: #{lstm_bot_forward.1} parent=1 // pred_check
      _
    $region39: #{lstm_bot_forward.1} parent=1 // pred_check_branch
      %774 = sbr.rel (0) target = $region41
    $region40: #{lstm_bot_forward.1} parent=1 // pred_region
      _
    $region41: #{lstm_bot_forward.1} parent=1 // pred_fallthru
      _
    %775 = vsyncpa [#allocation3], 1

</llo_original>
